<compile_context>
chip_gen: v5e
topology: v5e:2x2
jax: 0.10.0
libtpu: 0.0.40
codegen_flags: <defaults>
</compile_context>

<pallas_src>
import functools

import jax
import jax.numpy as jnp
from jax import lax
from jax.experimental import pallas as pl
from jax.experimental.pallas import tpu as pltpu


_EPS = 1e-12       # torch.nn.functional.normalize default eps
_NEG_BIG = -1e30   # additive softmax bias for padded key columns


def _round_up(x, m):
    return ((x + m - 1) // m) * m


def _contra_kernel(xq_ref, xkT_ref, *rest, has_mask, has_bias, n_real, tq, tk):
    """One (query-tile, key-tile) grid step.

    Inputs are pre-normalized; 1/temp is already folded into x_q.  Per step:
      sim   = xq_tile @ xkT_tile                  (MXU, f32 accumulation)
      online log-sum-exp of (sim + pad_bias) over key tiles
      S_i  += sum_j mask_ij * sim_ij              (diag-only for the eye mask)
    Finalize (last key tile): per-row loss = lse_i - S_i / rowsum_i.
    """
    idx = 0
    mask_ref = rowsum_ref = bias_ref = None
    if has_mask:
        mask_ref, rowsum_ref = rest[idx], rest[idx + 1]
        idx += 2
    if has_bias:
        bias_ref = rest[idx]
        idx += 1
    out_ref = rest[idx]
    m_sc, l_sc, s_sc = rest[idx + 1], rest[idx + 2], rest[idx + 3]

    qi = pl.program_id(0)
    ki = pl.program_id(1)

    @pl.when(ki == 0)
    def _init():
        m_sc[...] = jnp.full_like(m_sc, -jnp.inf)
        l_sc[...] = jnp.zeros_like(l_sc)
        s_sc[...] = jnp.zeros_like(s_sc)

    # sim tile = (xq_n / temp) @ xk_n^T ; RHS is pre-transposed (K, N) for MXU.
    sim = lax.dot_general(
        xq_ref[...], xkT_ref[...],
        dimension_numbers=(((1,), (0,)), ((), ())),
        preferred_element_type=jnp.float32,
    )                                                        # (TQ, TK) f32

    # Softmax view: padded key columns get a -1e30 additive bias (precomputed).
    sim_sm = sim + bias_ref[...] if has_bias else sim

    # Online log-sum-exp across key tiles.
    tile_max = jnp.max(sim_sm, axis=-1, keepdims=True)
    m_new = jnp.maximum(m_sc[...], tile_max)
    alpha = jnp.exp(m_sc[...] - m_new)
    l_sc[...] = alpha * l_sc[...] + jnp.sum(jnp.exp(sim_sm - m_new),
                                            axis=-1, keepdims=True)
    m_sc[...] = m_new

    # Masked-sum accumulator: S_i += sum_j mask_ij * sim_ij.
    if has_mask:
        s_sc[...] += jnp.sum(mask_ref[...].astype(jnp.float32) * sim,
                             axis=-1, keepdims=True)
    else:
        # Identity mask: only tiles overlapping the diagonal contribute.
        q0 = qi * tq
        k0 = ki * tk
        is_diag = jnp.logical_and(q0 < k0 + tk, k0 < q0 + tq)

        @pl.when(is_diag)
        def _diag():
            row = q0 + lax.broadcasted_iota(jnp.int32, (tq, tk), 0)
            col = k0 + lax.broadcasted_iota(jnp.int32, (tq, tk), 1)
            keep = jnp.logical_and(row == col, col < n_real)  # guard padded diag
            s_sc[...] += jnp.sum(jnp.where(keep, sim, 0.0),
                                 axis=-1, keepdims=True)

    @pl.when(ki == pl.num_programs(1) - 1)
    def _finalize():
        lse = m_sc[...] + jnp.log(l_sc[...])
        if has_mask:
            # sum_j nll_ij = lse_i - S_i / rowsum_i  (rowsum precomputed in wrapper;
            # rowsum==0 rows yield NaN, matching PyTorch).
            out_ref[...] = lse - s_sc[...] * pl.reciprocal(rowsum_ref[...],
                                                           approx=False)
        else:
            # Identity mask -> rowsum == 1 for every real row.
            out_ref[...] = lse - s_sc[...]


def contra_loss(x_q, x_k, mask_pos=None, temp=1.0, *,
                matmul_dtype=jnp.bfloat16, mask_store_dtype=jnp.bfloat16,
                tq_max=256, tk_max=1024, key_buffers=2):
    """Pallas implementation of ContraLoss.forward. Returns a scalar float32.

    matmul_dtype=jnp.bfloat16 (default) uses the MXU-native path; pass
    jnp.float32 for strict parity with an f32 reference.  Rows with
    mask_pos.sum(dim=1) == 0 produce NaN (matches PyTorch).
    """
    N, D = x_q.shape
    assert x_k.shape == (N, D)
    f32 = jnp.float32
    with_mask = mask_pos is not None

    # ---- one-time wrapper pass: L2 normalize, fold 1/temp, cast (hoisted) ----
    xq = x_q.astype(f32)
    xk = x_k.astype(f32)
    eps2 = jnp.float32(_EPS * _EPS)
    xqn = xq * lax.rsqrt(jnp.maximum(jnp.sum(xq * xq, axis=1, keepdims=True), eps2))
    xkn = xk * lax.rsqrt(jnp.maximum(jnp.sum(xk * xk, axis=1, keepdims=True), eps2))
    xqn = xqn * jnp.float32(1.0 / float(temp))   # fold 1/temp into the query side

    # ---- tile selection: lane-dense, (8,128)-aligned ----
    Dp = _round_up(D, 128)
    Np8 = _round_up(N, 8)
    if Np8 <= tq_max:
        if Np8 >= 256:
            # >=2 blocks on the parallel query axis (v7x megacore), >=128 rows each.
            TQ = _round_up((Np8 + 1) // 2, 8)
        else:
            TQ = Np8
    else:
        TQ = tq_max
    Nq = _round_up(N, TQ)
    Gq = Nq // TQ

    # Generation-aware VMEM budget (v7x has only 64 MiB physical).
    try:
        vmem_cap = int(pltpu.get_tpu_info().vmem_capacity_bytes)
    except Exception:
        vmem_cap = 128 << 20
    vmem_budget = int(vmem_cap * 0.70)

    mm_bytes = jnp.dtype(matmul_dtype).itemsize
    mk_bytes = jnp.dtype(mask_store_dtype).itemsize

    def _vmem_est(tq_, tk_):
        est = 2 * (tq_ * Dp + Dp * tk_) * mm_bytes           # double-buffered x tiles
        if with_mask:
            est += 2 * tq_ * tk_ * mk_bytes + 2 * tq_ * 4    # mask tiles + rowsum
        est += 2 * tk_ * 4                                   # padded-column bias row
        est += 2 * tq_ * 4 + 3 * tq_ * 4                     # output + m/l/S scratch
        est += 10 * tq_ * tk_ * 4                            # in-kernel f32 temporaries
        return est + (6 << 20)                               # Mosaic internal slack

    # Big key tiles amortize per-step overhead; shrink if VMEM-tight (v7x).
    TK = min(_round_up(N, 128), tk_max)
    while TK > 128 and _vmem_est(TQ, TK) > vmem_budget:
        TK = max(128, ((TK // 2) // 128) * 128)
    Nk = _round_up(N, TK)
    Gk = Nk // TK
    cols_padded = (Nk != N)
    vmem_limit = int(min(max(_vmem_est(TQ, TK), 16 << 20), vmem_budget))

    # ---- padded operands (normalization fused into these copies) ----
    xq_p = jnp.zeros((Nq, Dp), matmul_dtype).at[:N, :D].set(xqn.astype(matmul_dtype))
    xkT_p = jnp.zeros((Dp, Nk), matmul_dtype).at[:D, :N].set(
        xkn.astype(matmul_dtype).T)

    def _k_spec(shape, imap):
        # key_buffers > 2: deeper pipelining for the key-side streams (v5e sweep).
        if key_buffers != 2:
            return pl.BlockSpec(shape, imap, pipeline_mode=pl.Buffered(key_buffers))
        return pl.BlockSpec(shape, imap)

    in_specs = [
        pl.BlockSpec((TQ, Dp), lambda qi, ki: (qi, 0)),      # x_q tile (const in ki)
        _k_spec((Dp, TK), lambda qi, ki: (0, ki)),           # x_k^T tile
    ]
    args = [xq_p, xkT_p]

    if with_mask:
        mask_p = jnp.zeros((Nq, Nk), mask_store_dtype).at[:N, :N].set(
            mask_pos.astype(mask_store_dtype))
        rowsum = jnp.zeros((Nq, 1), f32).at[:N, :].set(
            jnp.sum(mask_pos.astype(f32), axis=1, keepdims=True))
        in_specs.append(_k_spec((TQ, TK), lambda qi, ki: (qi, ki)))
        args.append(mask_p)
        in_specs.append(pl.BlockSpec((TQ, 1), lambda qi, ki: (qi, 0)))
        args.append(rowsum)

    if cols_padded:
        bias = jnp.where(jnp.arange(Nk) < N, 0.0, _NEG_BIG).astype(f32).reshape(1, Nk)
        in_specs.append(pl.BlockSpec((1, TK), lambda qi, ki: (0, ki)))
        args.append(bias)

    kernel = functools.partial(
        _contra_kernel, has_mask=with_mask, has_bias=cols_padded,
        n_real=N, tq=TQ, tk=TK)

    per_row = pl.pallas_call(
        kernel,
        out_shape=jax.ShapeDtypeStruct((Nq, 1), jnp.float32),
        grid=(Gq, Gk),
        in_specs=in_specs,
        out_specs=pl.BlockSpec((TQ, 1), lambda qi, ki: (qi, 0)),
        scratch_shapes=[pltpu.VMEM((TQ, 1), jnp.float32)] * 3,   # m, l, S
        compiler_params=pltpu.CompilerParams(
            dimension_semantics=("parallel", "arbitrary"),
            vmem_limit_bytes=vmem_limit,
        ),
    )(*args)

    # TODO(synk): per-row partials use a (TQ,1) layout -> one masked store per
    # query-tile finalize; a lane-dense (1,TQ) output layout would remove it.
    # Tiny final reduction (N values) + mean normalization; padded query rows
    # (finite garbage / NaN) are sliced away before the sum.
    return jnp.sum(per_row[:N, 0]) / jnp.float32(N * N)


def _contra_loss_ref(x_q, x_k, mask_pos=None, temp=1.0):
    # Pure-JAX reference for correctness checking.
    eps = 1e-12
    xq = x_q / jnp.maximum(jnp.linalg.norm(x_q, axis=1, keepdims=True), eps)
    xk = x_k / jnp.maximum(jnp.linalg.norm(x_k, axis=1, keepdims=True), eps)
    N = xq.shape[0]
    if mask_pos is None:
        mask_pos = jnp.eye(N, dtype=jnp.float32)
    sim = (xq @ xk.T) / temp
    sim = -jax.nn.log_softmax(sim, axis=1)
    nll = sim * mask_pos / jnp.sum(mask_pos, axis=1, keepdims=True)
    return jnp.mean(nll)


if __name__ == "__main__":
    key = jax.random.PRNGKey(0)
    kq, kk, km = jax.random.split(key, 3)

    # Small shapes consistent with (batch, feature) contrastive embeddings.
    N, D = 8, 32
    x_q = jax.random.normal(kq, (N, D), dtype=jnp.float32)
    x_k = jax.random.normal(kk, (N, D), dtype=jnp.float32)

    # 1) default identity mask — strict f32 parity path
    loss = jax.block_until_ready(
        contra_loss(x_q, x_k, temp=0.5, matmul_dtype=jnp.float32))
    ref = jax.block_until_ready(_contra_loss_ref(x_q, x_k, temp=0.5))
    assert jnp.allclose(loss, ref, rtol=1e-5, atol=1e-5), (loss, ref)

    # 1b) default (bf16 MXU) path — looser tolerance
    loss_bf = jax.block_until_ready(contra_loss(x_q, x_k, temp=0.5))
    assert jnp.allclose(loss_bf, ref, rtol=3e-2, atol=3e-2), (loss_bf, ref)

    # 2) explicit positive mask (identity + extra positives; every row non-empty)
    extra = (jax.random.uniform(km, (N, N)) > 0.7).astype(jnp.float32)
    mask = jnp.clip(extra + jnp.eye(N, dtype=jnp.float32), 0.0, 1.0)
    loss_m = jax.block_until_ready(
        contra_loss(x_q, x_k, mask, temp=1.0, matmul_dtype=jnp.float32))
    ref_m = jax.block_until_ready(_contra_loss_ref(x_q, x_k, mask, temp=1.0))
    assert jnp.allclose(loss_m, ref_m, rtol=1e-5, atol=1e-5), (loss_m, ref_m)

    # 3) multi-tile path: 2 query tiles x 3 key tiles, padded N and D,
    #    diagonal-skip eye path and the padded-column bias row.
    N2, D2 = 320, 96
    kq2, kk2 = jax.random.split(kq)
    xq2 = jax.random.normal(kq2, (N2, D2), dtype=jnp.float32)
    xk2 = jax.random.normal(kk2, (N2, D2), dtype=jnp.float32)
    loss2 = jax.block_until_ready(
        contra_loss(xq2, xk2, temp=0.25, matmul_dtype=jnp.float32, tk_max=128))
    ref2 = jax.block_until_ready(_contra_loss_ref(xq2, xk2, temp=0.25))
    assert jnp.allclose(loss2, ref2, rtol=1e-5, atol=1e-5), (loss2, ref2)

    # 3b) same shapes, explicit mask + default bf16 path (mask stored bf16)
    km2 = jax.random.fold_in(km, 1)
    extra2 = (jax.random.uniform(km2, (N2, N2)) > 0.9).astype(jnp.float32)
    mask2 = jnp.clip(extra2 + jnp.eye(N2, dtype=jnp.float32), 0.0, 1.0)
    loss2m = jax.block_until_ready(
        contra_loss(xq2, xk2, mask2, temp=0.5, tk_max=128))
    ref2m = jax.block_until_ready(_contra_loss_ref(xq2, xk2, mask2, temp=0.5))
    assert jnp.allclose(loss2m, ref2m, rtol=3e-2, atol=3e-2), (loss2m, ref2m)

    print("KERNEL_OK")
</pallas_src>

<mosaic_0001>
module attributes {stable_mosaic.version = 11 : i64} {
  func.func @_contra_kernel(%arg0: i32, %arg1: i32, %arg2: memref<8x128xf32, #tpu.memory_space<vmem>>, %arg3: memref<128x128xf32, #tpu.memory_space<vmem>>, %arg4: memref<1x128xf32, #tpu.memory_space<vmem>>, %arg5: memref<8x1xf32, #tpu.memory_space<vmem>>, %arg6: memref<8x1xf32, #tpu.memory_space<vmem>>, %arg7: memref<8x1xf32, #tpu.memory_space<vmem>>, %arg8: memref<8x1xf32, #tpu.memory_space<vmem>>) attributes {dimension_semantics = [#tpu.dimension_semantics<parallel>, #tpu.dimension_semantics<arbitrary>], iteration_bounds = array<i64: 1, 1>, scalar_prefetch = 0 : i64, scratch_operands = 3 : i64, tpu.core_type = #tpu.core_type<tc>, window_params = [{transform_indices = @transform_0, window_bounds = array<i64: 8, 128>}, {transform_indices = @transform_1, window_bounds = array<i64: 128, 128>}, {transform_indices = @transform_2, window_bounds = array<i64: 1, 128>}, {transform_indices = @transform_3, window_bounds = array<i64: 8, 1>}]} {
    %c0_i32 = arith.constant 0 : i32
    %0 = arith.cmpi eq, %arg1, %c0_i32 : i32
    %1 = arith.extui %0 : i1 to i32
    %c0_i32_0 = arith.constant 0 : i32
    %2 = arith.cmpi ne, %1, %c0_i32_0 : i32
    scf.if %2 {
      %cst_23 = arith.constant 0xFF800000 : f32
      %38 = vector.broadcast %cst_23 : f32 to vector<8x1xf32>
      %c0_24 = arith.constant 0 : index
      %c0_25 = arith.constant 0 : index
      %39 = vector.load %arg6[%c0_24, %c0_25] : memref<8x1xf32, #tpu.memory_space<vmem>>, vector<8x1xf32>
      tpu.vector_store %arg6[%c0_24, %c0_25], %38 {strides = array<i32>} : memref<8x1xf32, #tpu.memory_space<vmem>>, vector<8x1xf32>,
      %cst_26 = arith.constant 0.000000e+00 : f32
      %40 = vector.broadcast %cst_26 : f32 to vector<8x1xf32>
      %c0_27 = arith.constant 0 : index
      %c0_28 = arith.constant 0 : index
      %41 = vector.load %arg7[%c0_27, %c0_28] : memref<8x1xf32, #tpu.memory_space<vmem>>, vector<8x1xf32>
      tpu.vector_store %arg7[%c0_27, %c0_28], %40 {strides = array<i32>} : memref<8x1xf32, #tpu.memory_space<vmem>>, vector<8x1xf32>,
      %cst_29 = arith.constant 0.000000e+00 : f32
      %42 = vector.broadcast %cst_29 : f32 to vector<8x1xf32>
      %c0_30 = arith.constant 0 : index
      %c0_31 = arith.constant 0 : index
      %43 = vector.load %arg8[%c0_30, %c0_31] : memref<8x1xf32, #tpu.memory_space<vmem>>, vector<8x1xf32>
      tpu.vector_store %arg8[%c0_30, %c0_31], %42 {strides = array<i32>} : memref<8x1xf32, #tpu.memory_space<vmem>>, vector<8x1xf32>,
    } else {
    }
    %c0 = arith.constant 0 : index
    %c0_1 = arith.constant 0 : index
    %3 = vector.load %arg2[%c0, %c0_1] : memref<8x128xf32, #tpu.memory_space<vmem>>, vector<8x128xf32>
    %c0_2 = arith.constant 0 : index
    %c0_3 = arith.constant 0 : index
    %4 = vector.load %arg3[%c0_2, %c0_3] : memref<128x128xf32, #tpu.memory_space<vmem>>, vector<128x128xf32>
    %cst = arith.constant dense<0.000000e+00> : vector<8x128xf32>
    %5 = tpu.matmul %3, %4, %cst {dimension_numbers = #tpu.dot_dimension_numbers<[1], [0], [0], [1], [0, 0, 1, 1], [], []>} : vector<8x128xf32>, vector<128x128xf32>, vector<8x128xf32> -> vector<8x128xf32>
    %c0_4 = arith.constant 0 : index
    %c0_5 = arith.constant 0 : index
    %6 = vector.load %arg4[%c0_4, %c0_5] : memref<1x128xf32, #tpu.memory_space<vmem>>, vector<1x128xf32>
    %7 = vector.broadcast %6 : vector<1x128xf32> to vector<8x128xf32>
    %8 = arith.addf %5, %7 : vector<8x128xf32>
    %cst_6 = arith.constant dense<0xFF800000> : vector<8xf32>
    %9 = vector.multi_reduction <maximumf>, %8, %cst_6 [1] : vector<8x128xf32> to vector<8xf32>
    %10 = vector.shape_cast %9 : vector<8xf32> to vector<8x1xf32>
    %c0_7 = arith.constant 0 : index
    %c0_8 = arith.constant 0 : index
    %11 = vector.load %arg6[%c0_7, %c0_8] : memref<8x1xf32, #tpu.memory_space<vmem>>, vector<8x1xf32>
    %12 = arith.maximumf %11, %10 : vector<8x1xf32>
    %c0_9 = arith.constant 0 : index
    %c0_10 = arith.constant 0 : index
    %13 = vector.load %arg6[%c0_9, %c0_10] : memref<8x1xf32, #tpu.memory_space<vmem>>, vector<8x1xf32>
    %14 = arith.subf %13, %12 : vector<8x1xf32>
    %15 = math.exp %14 : vector<8x1xf32>
    %c0_11 = arith.constant 0 : index
    %c0_12 = arith.constant 0 : index
    %16 = vector.load %arg7[%c0_11, %c0_12] : memref<8x1xf32, #tpu.memory_space<vmem>>, vector<8x1xf32>
    %17 = arith.mulf %15, %16 : vector<8x1xf32>
    %18 = vector.broadcast %12 : vector<8x1xf32> to vector<8x128xf32>
    %19 = arith.subf %8, %18 : vector<8x128xf32>
    %20 = math.exp %19 : vector<8x128xf32>
    %cst_13 = arith.constant dense<0.000000e+00> : vector<8xf32>
    %21 = vector.multi_reduction <add>, %20, %cst_13 [1] : vector<8x128xf32> to vector<8xf32>
    %22 = vector.shape_cast %21 : vector<8xf32> to vector<8x1xf32>
    %23 = arith.addf %17, %22 : vector<8x1xf32>
    %c0_14 = arith.constant 0 : index
    %c0_15 = arith.constant 0 : index
    %24 = vector.load %arg7[%c0_14, %c0_15] : memref<8x1xf32, #tpu.memory_space<vmem>>, vector<8x1xf32>
    tpu.vector_store %arg7[%c0_14, %c0_15], %23 {strides = array<i32>} : memref<8x1xf32, #tpu.memory_space<vmem>>, vector<8x1xf32>,
    %c0_16 = arith.constant 0 : index
    %c0_17 = arith.constant 0 : index
    %25 = vector.load %arg6[%c0_16, %c0_17] : memref<8x1xf32, #tpu.memory_space<vmem>>, vector<8x1xf32>
    tpu.vector_store %arg6[%c0_16, %c0_17], %12 {strides = array<i32>} : memref<8x1xf32, #tpu.memory_space<vmem>>, vector<8x1xf32>,
    %c8_i32 = arith.constant 8 : i32
    %26 = arith.muli %arg0, %c8_i32 : i32
    %c128_i32 = arith.constant 128 : i32
    %27 = arith.muli %arg1, %c128_i32 : i32
    %c128_i32_18 = arith.constant 128 : i32
    %28 = arith.addi %27, %c128_i32_18 : i32
    %29 = arith.cmpi slt, %26, %28 : i32
    %c8_i32_19 = arith.constant 8 : i32
    %30 = arith.addi %26, %c8_i32_19 : i32
    %31 = arith.cmpi slt, %27, %30 : i32
    %32 = arith.andi %29, %31 : i1
    %33 = arith.extui %32 : i1 to i32
    %c0_i32_20 = arith.constant 0 : i32
    %34 = arith.cmpi ne, %33, %c0_i32_20 : i32
    scf.if %34 {
      %38 = tpu.iota {dimensions = array<i32: 0>} : vector<8x128xi32>
      %39 = vector.broadcast %26 : i32 to vector<8x128xi32>
      %40 = arith.addi %39, %38 : vector<8x128xi32>
      %41 = tpu.iota {dimensions = array<i32: 1>} : vector<8x128xi32>
      %42 = vector.broadcast %27 : i32 to vector<8x128xi32>
      %43 = arith.addi %42, %41 : vector<8x128xi32>
      %44 = arith.cmpi eq, %40, %43 : vector<8x128xi32>
      %c8_i32_23 = arith.constant 8 : i32
      %45 = vector.broadcast %c8_i32_23 : i32 to vector<8x128xi32>
      %46 = arith.cmpi slt, %43, %45 : vector<8x128xi32>
      %47 = arith.andi %44, %46 : vector<8x128xi1>
      %c0_24 = arith.constant 0 : index
      %c0_25 = arith.constant 0 : index
      %48 = vector.load %arg8[%c0_24, %c0_25] : memref<8x1xf32, #tpu.memory_space<vmem>>, vector<8x1xf32>
      %cst_26 = arith.constant 0.000000e+00 : f32
      %49 = vector.broadcast %cst_26 : f32 to vector<8x128xf32>
      %50 = arith.select %47, %5, %49 : vector<8x128xi1>, vector<8x128xf32>
      %cst_27 = arith.constant dense<0.000000e+00> : vector<8xf32>
      %51 = vector.multi_reduction <add>, %50, %cst_27 [1] : vector<8x128xf32> to vector<8xf32>
      %52 = vector.shape_cast %51 : vector<8xf32> to vector<8x1xf32>
      %53 = arith.addf %48, %52 : vector<8x1xf32>
      %c0_28 = arith.constant 0 : index
      %c0_29 = arith.constant 0 : index
      %54 = vector.load %arg8[%c0_28, %c0_29] : memref<8x1xf32, #tpu.memory_space<vmem>>, vector<8x1xf32>
      tpu.vector_store %arg8[%c0_28, %c0_29], %53 {strides = array<i32>} : memref<8x1xf32, #tpu.memory_space<vmem>>, vector<8x1xf32>,
    } else {
    }
    %c0_i32_21 = arith.constant 0 : i32
    %35 = arith.cmpi eq, %arg1, %c0_i32_21 : i32
    %36 = arith.extui %35 : i1 to i32
    %c0_i32_22 = arith.constant 0 : i32
    %37 = arith.cmpi ne, %36, %c0_i32_22 : i32
    scf.if %37 {
      %c0_23 = arith.constant 0 : index
      %c0_24 = arith.constant 0 : index
      %38 = vector.load %arg6[%c0_23, %c0_24] : memref<8x1xf32, #tpu.memory_space<vmem>>, vector<8x1xf32>
      %c0_25 = arith.constant 0 : index
      %c0_26 = arith.constant 0 : index
      %39 = vector.load %arg7[%c0_25, %c0_26] : memref<8x1xf32, #tpu.memory_space<vmem>>, vector<8x1xf32>
      %40 = math.log %39 : vector<8x1xf32>
      %41 = arith.addf %38, %40 : vector<8x1xf32>
      %c0_27 = arith.constant 0 : index
      %c0_28 = arith.constant 0 : index
      %42 = vector.load %arg8[%c0_27, %c0_28] : memref<8x1xf32, #tpu.memory_space<vmem>>, vector<8x1xf32>
      %43 = arith.subf %41, %42 : vector<8x1xf32>
      %c0_29 = arith.constant 0 : index
      %c0_30 = arith.constant 0 : index
      %44 = vector.load %arg5[%c0_29, %c0_30] : memref<8x1xf32, #tpu.memory_space<vmem>>, vector<8x1xf32>
      tpu.vector_store %arg5[%c0_29, %c0_30], %43 {strides = array<i32>} : memref<8x1xf32, #tpu.memory_space<vmem>>, vector<8x1xf32>,
    } else {
    }
    return
  }
  func.func @transform_0(%arg0: i32, %arg1: i32) -> (i32, i32) {
    %c0_i32 = arith.constant 0 : i32
    %c0_i32_0 = arith.constant 0 : i32
    return %arg0, %c0_i32 : i32, i32
  }
  func.func @transform_1(%arg0: i32, %arg1: i32) -> (i32, i32) {
    %c0_i32 = arith.constant 0 : i32
    %c0_i32_0 = arith.constant 0 : i32
    return %c0_i32, %arg1 : i32, i32
  }
  func.func @transform_2(%arg0: i32, %arg1: i32) -> (i32, i32) {
    %c0_i32 = arith.constant 0 : i32
    %c0_i32_0 = arith.constant 0 : i32
    return %c0_i32, %arg1 : i32, i32
  }
  func.func @transform_3(%arg0: i32, %arg1: i32) -> (i32, i32) {
    %c0_i32 = arith.constant 0 : i32
    %c0_i32_0 = arith.constant 0 : i32
    return %arg0, %c0_i32 : i32, i32
  }
}

</mosaic_0001>

<llo_original>
// kernel: tpu_custom_call.1
$region0: #{tpu_custom_call.1}
  #allocation0 [shape = 'u32[]', space=smem, size = 0x4, offset = 0x4, fixed_abs, tag = 'smem constant byte address 0x4 - core index']
  #allocation1 [shape = 'u32[72,128]{1,0:T(1,128)}', space=vmem, size = 0x9000, scoped, tag = 'internal scratch']
  #allocation2 [shape = 'f32[8,1]{1,0:T(8,128)}', space=vmem, size = 0x1000, scoped, tag = 'scratch operand']
  #allocation3 [shape = 'f32[8,1]{1,0:T(8,128)}', space=vmem, size = 0x1000, scoped, tag = 'scratch operand']
  #allocation4 [shape = 'f32[8,1]{1,0:T(8,128)}', space=vmem, size = 0x1000, scoped, tag = 'scratch operand']
  %s0 = inlined_call_operand.hbm [shape: f32[8,128], index: 0, kind: input, shape index: {}]
  %s1 = inlined_call_operand.hbm [shape: f32[128,128], index: 1, kind: input, shape index: {}]
  %s2 = inlined_call_operand.vmem [shape: f32[1,128], index: 2, kind: input, shape index: {}]
  %s3 = inlined_call_operand.vmem [shape: f32[8,1], index: 3, kind: output, shape index: {}]
  %s4 = sld [smem:[#allocation0]]
  $region42: #{tpu_custom_call.1} parent=0
    _
  %s6 = ssub.s32 1, %s4
  %s7 = scalar_select 0, %s6, %s4
  $region1: #{tpu_custom_call.1} parent=0
    #allocation5 [shape = 'u8[4096]{0}', space=vmem, size = 0x1000, scoped, tag = 'input window, operand 0, single buffered']
    #allocation6 [shape = 's32[1]{0}', space=sflag, size = 0x4, scoped, tag = 'scoped memory for tpu_custom_call.1']
    #allocation7 [shape = 'u8[65536]{0}', space=vmem, size = 0x10000, scoped, tag = 'input window, operand 1, single buffered']
    #allocation8 [shape = 's32[1]{0}', space=sflag, size = 0x4, scoped, tag = 'scoped memory for tpu_custom_call.1']
    %8 = vsyncpa [#allocation6], 0
    %9 = vsyncpa [#allocation8], 0
    // Predicated region
    $region2: #{tpu_custom_call.1} parent=1 // pred_check
      _
    $region3: #{tpu_custom_call.1} parent=1 // pred_check_branch
      %11 = sbr.rel (0) target = $region5
    $region4: #{tpu_custom_call.1} parent=1 // pred_region
      %13 = vsyncadd [#allocation6], 0
      %s15 = sshll.u32 %s0, 4
      %s16 = int_to_ptr.hbm [resolvable:$true] %s15
      %s17 = sshll.u32 [#allocation5], 4
      %s18 = int_to_ptr.vmem [resolvable:$true] %s17
      %20 = dma.hbm_to_vmem [thread:$0]  %s16, 128, %s18, [#allocation6]
    $region5: #{tpu_custom_call.1} parent=1 // pred_fallthru
      _
    // Predicated region
    $region6: #{tpu_custom_call.1} parent=1 // pred_check
      _
    $region7: #{tpu_custom_call.1} parent=1 // pred_check_branch
      %22 = sbr.rel (0) target = $region9
    $region8: #{tpu_custom_call.1} parent=1 // pred_region
      %24 = vsyncadd [#allocation8], 0
      %s25 = sshll.u32 %s1, 4
      %s26 = int_to_ptr.hbm [resolvable:$true] %s25
      %s27 = sshll.u32 [#allocation7], 4
      %s28 = int_to_ptr.vmem [resolvable:$true] %s27
      %33 = dma.hbm_to_vmem [thread:$0]  %s26, 2048, %s28, [#allocation8], 128, 128, 8
    $region9: #{tpu_custom_call.1} parent=1 // pred_fallthru
      _
    // Predicated region
    $region10: #{tpu_custom_call.1} parent=1 // pred_check
      _
    $region11: #{tpu_custom_call.1} parent=1 // pred_check_branch
      %35 = sbr.rel (0) target = $region13
    $region12: #{tpu_custom_call.1} parent=1 // pred_region
      _
    $region13: #{tpu_custom_call.1} parent=1 // pred_fallthru
      _
    // Predicated region
    $region14: #{tpu_custom_call.1} parent=1 // pred_check
      _
    $region15: #{tpu_custom_call.1} parent=1 // pred_check_branch
      %37 = sbr.rel (0) target = $region17
    $region16: #{tpu_custom_call.1} parent=1 // pred_region
      %39 = dma.done [#allocation6], 128
    $region17: #{tpu_custom_call.1} parent=1 // pred_fallthru
      _
    // Predicated region
    $region18: #{tpu_custom_call.1} parent=1 // pred_check
      _
    $region19: #{tpu_custom_call.1} parent=1 // pred_check_branch
      %41 = sbr.rel (0) target = $region21
    $region20: #{tpu_custom_call.1} parent=1 // pred_region
      %43 = dma.done [#allocation8], 2048
    $region21: #{tpu_custom_call.1} parent=1 // pred_fallthru
      _
    %p44 = scmp.eq.s32.totalorder 0, 0
    // Predicated region
    $region22: #{tpu_custom_call.1} parent=1 // pred_check
      %p45 = pneg %p44
    $region23: #{tpu_custom_call.1} parent=1 // pred_check_branch
      %47 = sbr.rel (%p45) target = $region25
    $region24: #{tpu_custom_call.1} parent=1 // pred_region
      %vm48 = vcmask 7168
      %49 = vst.msk [vmem:[#allocation2] sm:$0xff] %vm48, -inf
      %50 = vst.msk [vmem:[#allocation3] sm:$0xff] %vm48, 0.0
      %51 = vst.msk [vmem:[#allocation4] sm:$0xff] %vm48, 0.0
    $region25: #{tpu_custom_call.1} parent=1 // pred_fallthru
      _
    %v52 = vld [vmem:[#allocation5] sm:$0xff]
    %v53 = vld [vmem:[#allocation7] sm:$0xff]
    %v54 = vld [vmem:[#allocation7 + $0x8] sm:$0xff]
    %v55 = vld [vmem:[#allocation7 + $0x10] sm:$0xff]
    %v56 = vld [vmem:[#allocation7 + $0x18] sm:$0xff]
    %v57 = vld [vmem:[#allocation7 + $0x20] sm:$0xff]
    %v58 = vld [vmem:[#allocation7 + $0x28] sm:$0xff]
    %v59 = vld [vmem:[#allocation7 + $0x30] sm:$0xff]
    %v60 = vld [vmem:[#allocation7 + $0x38] sm:$0xff]
    %v61 = vld [vmem:[#allocation7 + $0x40] sm:$0xff]
    %v62 = vld [vmem:[#allocation7 + $0x48] sm:$0xff]
    %v63 = vld [vmem:[#allocation7 + $0x50] sm:$0xff]
    %v64 = vld [vmem:[#allocation7 + $0x58] sm:$0xff]
    %v65 = vld [vmem:[#allocation7 + $0x60] sm:$0xff]
    %v66 = vld [vmem:[#allocation7 + $0x68] sm:$0xff]
    %v67 = vld [vmem:[#allocation7 + $0x70] sm:$0xff]
    %v68 = vld [vmem:[#allocation7 + $0x78] sm:$0xff]
    %69 = vmatpush.msra.mxu0 %v68
    %70 = vmatpush.msra.mxu0 %v67
    %71 = vmatpush.msra.mxu0 %v66
    %72 = vmatpush.msra.mxu0 %v65
    %73 = vmatpush.msra.mxu0 %v64
    %74 = vmatpush.msra.mxu0 %v63
    %75 = vmatpush.msra.mxu0 %v62
    %76 = vmatpush.msra.mxu0 %v61
    %77 = vmatpush.msra.mxu0 %v60
    %78 = vmatpush.msra.mxu0 %v59
    %79 = vmatpush.msra.mxu0 %v58
    %80 = vmatpush.msra.mxu0 %v57
    %81 = vmatpush.msra.mxu0 %v56
    %82 = vmatpush.msra.mxu0 %v55
    %83 = vmatpush.msra.mxu0 %v54
    %84 = vmatpush.msra.mxu0 %v53
    %85 = vmatmul.f32.gmra.mxu0 %v52
    %v86 = vpop.f32.mrf.mxu0
    %v87 = vadd.f32 0.0, %v86
    %88 = vdwg.mxu0
    %v89 = vld [vmem:[%s2] sm:$0x1]
    %v91 = vperm.slane %v89, 0
    %v93 = vadd.f32 %v87, %v91
    %94 = vmax.xlane.f32.xlu0 %v93
    %v95 = vpop.xlane.xlu0 %94
    %v96 = vld [vmem:[#allocation2] sm:$0xff]
    %v97 = vmax.f32 %v96, %v95
    %v98 = vsub.f32 %v96, %v97
    %v99 = vmul.f32 %v98, 1.442695
    %v100 = vpow.pop %v99
    %v101 = vld [vmem:[#allocation3] sm:$0xff]
    %v102 = vmul.f32 %v100, %v101
    %104 = vset.pattern.permute.xlu0 0
    %105 = vperm.xlu0 %104, %v97
    %v106 = vpop.permute.xlu0 %105
    %v108 = vsub.f32 %v93, %v106
    %v109 = vmul.f32 %v108, 1.442695
    %v110 = vpow.pop %v109
    %111 = vadd.xlane.f32.xlu0 %v110
    %v112 = vpop.xlane.xlu0 %111
    %v113 = vadd.f32 %v102, %v112
    %vm114 = vcmask 7168
    %115 = vst.msk [vmem:[#allocation3] sm:$0xff] %vm114, %v113
    %116 = vst.msk [vmem:[#allocation2] sm:$0xff] %vm114, %v97
    %s117 = smul.u32 0, 8
    %s118 = smul.u32 0, 128
    %s119 = sadd.s32 %s118, 128
    %p120 = scmp.lt.s32.totalorder %s117, %s119
    %s121 = sadd.s32 %s117, 8
    %p122 = scmp.lt.s32.totalorder %s118, %s121
    %p123 = pnand %p120, %p122
    %p124 = pneg %p123
    // Predicated region
    $region26: #{tpu_custom_call.1} parent=1 // pred_check
      _
    $region27: #{tpu_custom_call.1} parent=1 // pred_check_branch
      %126 = sbr.rel (%p123) target = $region29
    $region28: #{tpu_custom_call.1} parent=1 // pred_region
      %v127 = vlaneseq
      %v128 = vshrl.u32 %v127, 7
      %v129 = vstv %s117
      %v130 = vadd.s32 %v129, %v128
      %v131 = vlaneseq
      %v132 = vand.u32 %v131, 127
      %v133 = vstv %s118
      %v134 = vadd.s32 %v133, %v132
      %vm135 = vcmp.eq.s32.totalorder %v130, %v134
      %vm136 = vcmp.lt.s32.totalorder %v134, 8
      %vm137 = vmand %vm135, %vm136
      %v138 = vld [vmem:[#allocation4] sm:$0xff]
      %v139 = vsel %vm137, %v87, 0.0
      %140 = vadd.xlane.f32.xlu0 %v139
      %v141 = vpop.xlane.xlu0 %140
      %v142 = vadd.f32 %v138, %v141
      %143 = vst.msk [vmem:[#allocation4] sm:$0xff] %vm114, %v142
    $region29: #{tpu_custom_call.1} parent=1 // pred_fallthru
      _
    // Predicated region
    $region30: #{tpu_custom_call.1} parent=1 // pred_check
      %p144 = pneg %p44
    $region31: #{tpu_custom_call.1} parent=1 // pred_check_branch
      %146 = sbr.rel (%p144) target = $region33
    $region32: #{tpu_custom_call.1} parent=1 // pred_region
      %v147 = vld [vmem:[#allocation2] sm:$0xff]
      %v148 = vld [vmem:[#allocation3] sm:$0xff]
      %v149 = vlog2.pop %v148
      %v150 = vmul.f32 %v149, 0.6931472
      %v151 = vadd.f32 %v147, %v150
      %v152 = vld [vmem:[#allocation4] sm:$0xff]
      %v153 = vsub.f32 %v151, %v152
      %154 = vst.msk [vmem:[%s3] sm:$0xff] %vm114, %v153
    $region33: #{tpu_custom_call.1} parent=1 // pred_fallthru
      _
    // Predicated region
    $region34: #{tpu_custom_call.1} parent=1 // pred_check
      _
    $region35: #{tpu_custom_call.1} parent=1 // pred_check_branch
      %156 = sbr.rel (0) target = $region37
    $region36: #{tpu_custom_call.1} parent=1 // pred_region
      _
    $region37: #{tpu_custom_call.1} parent=1 // pred_fallthru
      _
    // Predicated region
    $region38: #{tpu_custom_call.1} parent=1 // pred_check
      _
    $region39: #{tpu_custom_call.1} parent=1 // pred_check_branch
      %158 = sbr.rel (0) target = $region41
    $region40: #{tpu_custom_call.1} parent=1 // pred_region
      _
    $region41: #{tpu_custom_call.1} parent=1 // pred_fallthru
      _
    %159 = vsyncpa [#allocation6], 1
    %160 = vsyncpa [#allocation8], 1

</llo_original>
